<compile_context>
chip_gen: v7x
topology: tpu7x:2x2x1
jax: 0.10.0
libtpu: 0.0.40
codegen_flags: <defaults>
</compile_context>

<pallas_src>
import jax
import jax.numpy as jnp
from jax import lax
from jax.experimental import pallas as pl
from jax.experimental.pallas import tpu as pltpu


_SLAB = 128  # lane width of the prob column window gathered per row


# ---------------------------------------------------------------------------
# Device introspection (generation-aware defaults)
# ---------------------------------------------------------------------------

def _device_kind():
    try:
        return jax.devices()[0].device_kind.lower()
    except Exception:
        return ""


def _default_num_core_splits():
    kind = _device_kind()
    # Single-TensorCore chips: v5e / v6e ("lite" variants).
    if "lite" in kind or "v5e" in kind or "v6e" in kind:
        return 1
    # Two TensorCores per device: v4 / v5p megacore, v7x.
    if any(m in kind for m in ("v7", "7x", "v4", "v5p")):
        return 2
    return 1


def _vmem_limits():
    """Returns (tile budget bytes, scoped vmem limit bytes) per generation."""
    try:
        cap = int(pltpu.get_tpu_info().vmem_capacity_bytes)
    except Exception:
        cap = 64 * 1024 * 1024            # conservative fallback (v7x per-core)
    if cap <= 80 * 1024 * 1024:           # v7x: 64 MiB physical per core
        return 24 * 1024 * 1024, 48 * 1024 * 1024
    return 64 * 1024 * 1024, 112 * 1024 * 1024   # v5e / v6e: 128 MiB physical


# ---------------------------------------------------------------------------
# Kernel 1: dense streaming (small C) -- full (tile_n, C) prob tiles in VMEM
# ---------------------------------------------------------------------------

def _make_stream_kernel(n_rows, tile_n, tiles_per_core):
    def kernel(prob_ref, tgt_ref, rwd_ref, out_ref, acc_ref):
        c = pl.program_id(0)
        t = pl.program_id(1)

        @pl.when(t == 0)
        def _init():
            acc_ref[...] = jnp.zeros_like(acc_ref)

        prob = prob_ref[...]                      # (tile_n, C), native dtype
        tgt = tgt_ref[...]                        # (tile_n, 1) int32
        rwd = rwd_ref[...]                        # (tile_n, 1) float32

        # prob is NOT padded on the host, so ragged / duplicated tiles must be
        # masked explicitly (garbage * 0 could still be NaN).
        base = (c * tiles_per_core + t) * tile_n
        row = base + lax.broadcasted_iota(jnp.int32, (tile_n, 1), 0)
        valid = row < n_rows

        col = lax.broadcasted_iota(jnp.int32, prob.shape, 1)
        hit = valid & (col == tgt)
        selected = jnp.sum(jnp.where(hit, prob, 0).astype(jnp.float32),
                           axis=1, keepdims=True)          # (tile_n, 1) f32
        acc_ref[...] += selected * rwd

        @pl.when(t == pl.num_programs(1) - 1)
        def _finalize():
            out_ref[...] = (-jnp.sum(acc_ref[...])).reshape(1, 1, 1)

    return kernel


# ---------------------------------------------------------------------------
# Kernel 2: HBM gather (large C) -- one 128-lane window DMA per row
# ---------------------------------------------------------------------------

def _make_gather_kernel(n_rows, n_cols, tile_n, tiles_per_core):
    def kernel(tgt_smem, prob_hbm, tgt_ref, rwd_ref, out_ref,
               gbuf, copy_sem, acc_ref):
        c = pl.program_id(0)
        t = pl.program_id(1)

        @pl.when(t == 0)
        def _init():
            acc_ref[...] = jnp.zeros_like(acc_ref)

        base = (c * tiles_per_core + t) * tile_n

        # ---- issue one small DMA per row: prob[row, win:win+128] ----------
        @pl.loop(0, tile_n)
        def _issue(r):
            row = base + r
            row_c = jnp.minimum(row, n_rows - 1)        # clamp padded rows
            tgt = tgt_smem[row]                         # padded, in-bounds
            start = jnp.minimum((tgt // _SLAB) * _SLAB, n_cols - _SLAB)
            flat = row_c * n_cols + start               # offset in flat prob
            pltpu.make_async_copy(
                prob_hbm.at[pl.ds(flat, _SLAB)],
                gbuf.at[r],
                copy_sem.at[0],
            ).start()

        # ---- wait for all row gathers (same-shaped dummy descriptors) -----
        @pl.loop(0, tile_n)
        def _drain(r):
            del r
            pltpu.make_async_copy(
                prob_hbm.at[pl.ds(0, _SLAB)],
                gbuf.at[0],
                copy_sem.at[0],
            ).wait()

        # ---- vectorized select + accumulate --------------------------------
        vals = gbuf[...]                                # (tile_n, 128)
        tgt_v = tgt_ref[...]                            # (tile_n, 1) int32
        rwd_v = rwd_ref[...]                            # (tile_n, 1) float32
        start_v = jnp.minimum((tgt_v // _SLAB) * _SLAB, n_cols - _SLAB)
        local = tgt_v - start_v                         # column inside window
        lane = lax.broadcasted_iota(jnp.int32, vals.shape, 1)
        row = base + lax.broadcasted_iota(jnp.int32, (tile_n, 1), 0)
        valid = row < n_rows
        hit = valid & (lane == local)
        selected = jnp.sum(jnp.where(hit, vals, 0).astype(jnp.float32),
                           axis=1, keepdims=True)
        acc_ref[...] += selected * rwd_v

        @pl.when(t == pl.num_programs(1) - 1)
        def _finalize():
            out_ref[...] = (-jnp.sum(acc_ref[...])).reshape(1, 1, 1)

    return kernel


# ---------------------------------------------------------------------------
# Wrapper
# ---------------------------------------------------------------------------

def gan_loss(prob, target, reward, *,
             num_core_splits=None,
             vmem_budget_bytes=None,
             max_tile_n=2048,
             gather_tile_n=256,
             gather_min_cols=4096):
    """prob: (N, C) float, target: (N,) int, reward: (N,) float -> scalar f32."""
    N, C = prob.shape
    target = target.astype(jnp.int32)
    reward = reward.astype(jnp.float32)
    itemsize = jnp.dtype(prob.dtype).itemsize

    budget, vmem_limit = _vmem_limits()
    if vmem_budget_bytes is not None:
        budget = vmem_budget_bytes
    if num_core_splits is None:
        num_core_splits = _default_num_core_splits()

    # Gather only pays off once the full-row stream (C*itemsize/row of HBM
    # time) exceeds the per-row DMA-descriptor issue cost.
    use_gather = C >= max(gather_min_cols, _SLAB)

    # ---- row-tile sizing against the per-generation VMEM budget -----------
    if use_gather:
        # gather buffer + double-buffered lane-padded (tile_n,1) blocks + acc
        per_row = _SLAB * itemsize + 2 * 2 * 512 + 512
        tile_n = min(budget // per_row, gather_tile_n)
    else:
        # double-buffered (tile_n, C) prob tile + target/reward blocks + acc
        per_row = 2 * C * itemsize + 2 * 2 * 512 + 512
        tile_n = min(budget // per_row, max_tile_n)
    tile_n = max(8, (tile_n // 8) * 8)
    tile_n = min(tile_n, max(8, (N // 8) * 8))      # don't exceed what N needs

    tiles_total = pl.cdiv(N, tile_n)
    num_core_splits = max(1, min(num_core_splits, tiles_total))
    tiles_per_core = pl.cdiv(tiles_total, num_core_splits)
    n_pad = num_core_splits * tiles_per_core * tile_n

    # Only the tiny (N,) vectors are padded; prob is never padded or copied.
    if n_pad != N:
        pad = n_pad - N
        target = jnp.pad(target, (0, pad))          # padded rows: target 0,
        reward = jnp.pad(reward, (0, pad))          # reward 0, and row-masked
    target2 = target.reshape(n_pad, 1)
    reward2 = reward.reshape(n_pad, 1)

    def row_block(c, t, *_):
        return (c * tiles_per_core + t, 0)

    def prob_block(c, t, *_):
        # Clamp so fully-padded duplicate tiles never index past prob's rows;
        # the in-kernel row mask discards whatever is loaded for them.
        return (jnp.minimum(c * tiles_per_core + t, tiles_total - 1), 0)

    out_spec = pl.BlockSpec((1, 1, 1), lambda c, t, *_: (c, 0, 0))
    out_shape = jax.ShapeDtypeStruct((num_core_splits, 1, 1), jnp.float32)
    compiler_params = pltpu.CompilerParams(
        dimension_semantics=("parallel", "arbitrary"),
        vmem_limit_bytes=vmem_limit)

    if use_gather:
        kernel = _make_gather_kernel(N, C, tile_n, tiles_per_core)
        cost = pl.CostEstimate(
            flops=3 * N * _SLAB,
            transcendentals=0,
            bytes_accessed=(N * _SLAB * itemsize          # gathered windows
                            + n_pad * 8 + n_pad * 4       # target/reward + SMEM
                            + num_core_splits * 4))
        grid_spec = pltpu.PrefetchScalarGridSpec(
            num_scalar_prefetch=1,                        # target -> SMEM
            grid=(num_core_splits, tiles_per_core),
            in_specs=[
                pl.BlockSpec(memory_space=pl.ANY),        # prob (flat, in HBM)
                pl.BlockSpec((tile_n, 1), row_block),     # target (vector form)
                pl.BlockSpec((tile_n, 1), row_block),     # reward
            ],
            out_specs=out_spec,
            scratch_shapes=[
                pltpu.VMEM((tile_n, _SLAB), prob.dtype),  # gather buffer
                pltpu.SemaphoreType.DMA((1,)),
                pltpu.VMEM((tile_n, 1), jnp.float32),     # accumulator
            ])
        partials = pl.pallas_call(
            kernel, out_shape=out_shape, grid_spec=grid_spec,
            compiler_params=compiler_params, cost_estimate=cost,
        )(target, prob.reshape(-1), target2, reward2)
    else:
        kernel = _make_stream_kernel(N, tile_n, tiles_per_core)
        cost = pl.CostEstimate(
            flops=N * C,
            transcendentals=0,
            bytes_accessed=(num_core_splits * tiles_per_core * tile_n * C
                            * itemsize
                            + n_pad * 8 + num_core_splits * 4))
        grid_spec = pltpu.PrefetchScalarGridSpec(
            num_scalar_prefetch=0,
            grid=(num_core_splits, tiles_per_core),
            in_specs=[
                pl.BlockSpec((tile_n, C), prob_block),    # prob, native dtype
                pl.BlockSpec((tile_n, 1), row_block),     # target
                pl.BlockSpec((tile_n, 1), row_block),     # reward
            ],
            out_specs=out_spec,
            scratch_shapes=[pltpu.VMEM((tile_n, 1), jnp.float32)])
        partials = pl.pallas_call(
            kernel, out_shape=out_shape, grid_spec=grid_spec,
            compiler_params=compiler_params, cost_estimate=cost,
        )(prob, target2, reward2)

    # Per-core partials are already negated in-kernel.
    return jnp.sum(partials)


# ---------------------------------------------------------------------------
# Self-test
# ---------------------------------------------------------------------------

if __name__ == "__main__":
    key = jax.random.PRNGKey(0)

    def reference(prob, target, reward):
        n = prob.shape[0]
        return -jnp.sum(prob[jnp.arange(n), target] * reward)

    # (N, C, kwargs): small C -> streaming path, forced small gather_min_cols
    # -> gather path; ragged N exercises in-kernel row masking; the explicit
    # num_core_splits=2 exercises the leading "parallel" axis on any chip.
    cases = [
        (8, 16, {}),                                               # exact tile
        (13, 64, {}),                                              # ragged rows
        (50, 200, {"num_core_splits": 2, "gather_min_cols": 128}), # gather
    ]

    keys = jax.random.split(key, 3 * len(cases))
    for idx, (n, c, kw) in enumerate(cases):
        k1, k2, k3 = keys[3 * idx], keys[3 * idx + 1], keys[3 * idx + 2]
        prob = jax.nn.log_softmax(
            jax.random.normal(k1, (n, c), dtype=jnp.float32), axis=-1)
        target = jax.random.randint(k2, (n,), 0, c, dtype=jnp.int32)
        reward = jax.random.uniform(k3, (n,), dtype=jnp.float32)

        out = gan_loss(prob, target, reward, **kw)
        jax.block_until_ready(out)
        ref = reference(prob, target, reward)
        assert jnp.allclose(out, ref, rtol=1e-5, atol=1e-5), (n, c, out, ref)

    print("KERNEL_OK")
</pallas_src>

<mosaic_0001>
module attributes {stable_mosaic.version = 11 : i64} {
  func.func @kernel(%arg0: i32, %arg1: i32, %arg2: memref<8x16xf32, #tpu.memory_space<vmem>>, %arg3: memref<8x1xi32, #tpu.memory_space<vmem>>, %arg4: memref<8x1xf32, #tpu.memory_space<vmem>>, %arg5: memref<1x1x1xf32, #tpu.memory_space<vmem>>, %arg6: memref<8x1xf32, #tpu.memory_space<vmem>>) attributes {dimension_semantics = [#tpu.dimension_semantics<parallel>, #tpu.dimension_semantics<arbitrary>], iteration_bounds = array<i64: 1, 1>, scalar_prefetch = 0 : i64, scratch_operands = 1 : i64, tpu.core_type = #tpu.core_type<tc>, window_params = [{transform_indices = @transform_0, window_bounds = array<i64: 8, 16>}, {transform_indices = @transform_1, window_bounds = array<i64: 8, 1>}, {transform_indices = @transform_2, window_bounds = array<i64: 8, 1>}, {transform_indices = @transform_3, window_bounds = array<i64: 1, 1, 1>}]} {
    %c0_i32 = arith.constant 0 : i32
    %0 = arith.cmpi eq, %arg1, %c0_i32 : i32
    %1 = arith.extui %0 : i1 to i32
    %c0_i32_0 = arith.constant 0 : i32
    %2 = arith.cmpi ne, %1, %c0_i32_0 : i32
    scf.if %2 {
      %cst_14 = arith.constant 0.000000e+00 : f32
      %31 = vector.broadcast %cst_14 : f32 to vector<8x1xf32>
      %c0_15 = arith.constant 0 : index
      %c0_16 = arith.constant 0 : index
      %32 = vector.load %arg6[%c0_15, %c0_16] : memref<8x1xf32, #tpu.memory_space<vmem>>, vector<8x1xf32>
      tpu.vector_store %arg6[%c0_15, %c0_16], %31 {strides = array<i32>} : memref<8x1xf32, #tpu.memory_space<vmem>>, vector<8x1xf32>,
    } else {
    }
    %c0 = arith.constant 0 : index
    %c0_1 = arith.constant 0 : index
    %3 = vector.load %arg2[%c0, %c0_1] : memref<8x16xf32, #tpu.memory_space<vmem>>, vector<8x16xf32>
    %c0_2 = arith.constant 0 : index
    %c0_3 = arith.constant 0 : index
    %4 = vector.load %arg3[%c0_2, %c0_3] : memref<8x1xi32, #tpu.memory_space<vmem>>, vector<8x1xi32>
    %c0_4 = arith.constant 0 : index
    %c0_5 = arith.constant 0 : index
    %5 = vector.load %arg4[%c0_4, %c0_5] : memref<8x1xf32, #tpu.memory_space<vmem>>, vector<8x1xf32>
    %c1_i32 = arith.constant 1 : i32
    %6 = arith.muli %arg0, %c1_i32 : i32
    %7 = arith.addi %6, %arg1 : i32
    %c8_i32 = arith.constant 8 : i32
    %8 = arith.muli %7, %c8_i32 : i32
    %9 = tpu.iota {dimensions = array<i32: 0>} : vector<8x1xi32>
    %10 = vector.broadcast %8 : i32 to vector<8x1xi32>
    %11 = arith.addi %10, %9 : vector<8x1xi32>
    %c8_i32_6 = arith.constant 8 : i32
    %12 = vector.broadcast %c8_i32_6 : i32 to vector<8x1xi32>
    %13 = arith.cmpi slt, %11, %12 : vector<8x1xi32>
    %14 = tpu.iota {dimensions = array<i32: 1>} : vector<8x16xi32>
    %15 = vector.broadcast %4 : vector<8x1xi32> to vector<8x16xi32>
    %16 = arith.cmpi eq, %14, %15 : vector<8x16xi32>
    %17 = vector.broadcast %13 : vector<8x1xi1> to vector<8x16xi1>
    %18 = arith.andi %17, %16 : vector<8x16xi1>
    %c0_i32_7 = arith.constant 0 : i32
    %19 = arith.sitofp %c0_i32_7 : i32 to f32
    %20 = vector.broadcast %19 : f32 to vector<8x16xf32>
    %21 = arith.select %18, %3, %20 : vector<8x16xi1>, vector<8x16xf32>
    %cst = arith.constant dense<0.000000e+00> : vector<8xf32>
    %22 = vector.multi_reduction <add>, %21, %cst [1] : vector<8x16xf32> to vector<8xf32>
    %23 = vector.shape_cast %22 : vector<8xf32> to vector<8x1xf32>
    %c0_8 = arith.constant 0 : index
    %c0_9 = arith.constant 0 : index
    %24 = vector.load %arg6[%c0_8, %c0_9] : memref<8x1xf32, #tpu.memory_space<vmem>>, vector<8x1xf32>
    %25 = arith.mulf %23, %5 : vector<8x1xf32>
    %26 = arith.addf %24, %25 : vector<8x1xf32>
    %c0_10 = arith.constant 0 : index
    %c0_11 = arith.constant 0 : index
    %27 = vector.load %arg6[%c0_10, %c0_11] : memref<8x1xf32, #tpu.memory_space<vmem>>, vector<8x1xf32>
    tpu.vector_store %arg6[%c0_10, %c0_11], %26 {strides = array<i32>} : memref<8x1xf32, #tpu.memory_space<vmem>>, vector<8x1xf32>,
    %c0_i32_12 = arith.constant 0 : i32
    %28 = arith.cmpi eq, %arg1, %c0_i32_12 : i32
    %29 = arith.extui %28 : i1 to i32
    %c0_i32_13 = arith.constant 0 : i32
    %30 = arith.cmpi ne, %29, %c0_i32_13 : i32
    scf.if %30 {
      %c0_14 = arith.constant 0 : index
      %c0_15 = arith.constant 0 : index
      %31 = vector.load %arg6[%c0_14, %c0_15] : memref<8x1xf32, #tpu.memory_space<vmem>>, vector<8x1xf32>
      %32 = vector.shape_cast %31 : vector<8x1xf32> to vector<1x8x1xf32>
      %cst_16 = arith.constant dense<0.000000e+00> : vector<1xf32>
      %33 = vector.multi_reduction <add>, %32, %cst_16 [1, 2] : vector<1x8x1xf32> to vector<1xf32>
      %34 = vector.shape_cast %33 : vector<1xf32> to vector<1x1x1xf32>
      %35 = vector.extract %34[0, 0, 0] : f32 from vector<1x1x1xf32>
      %cst_17 = arith.constant 0.000000e+00 : f32
      %36 = arith.subf %cst_17, %35 : f32
      %37 = vector.broadcast %36 : f32 to vector<1x1x1xf32>
      %c0_18 = arith.constant 0 : index
      %c0_19 = arith.constant 0 : index
      %c0_20 = arith.constant 0 : index
      %38 = vector.load %arg5[%c0_18, %c0_19, %c0_20] : memref<1x1x1xf32, #tpu.memory_space<vmem>>, vector<1x1x1xf32>
      tpu.vector_store %arg5[%c0_18, %c0_19, %c0_20], %37 {strides = array<i32>} : memref<1x1x1xf32, #tpu.memory_space<vmem>>, vector<1x1x1xf32>,
    } else {
    }
    return
  }
  func.func @transform_0(%arg0: i32, %arg1: i32) -> (i32, i32) {
    %c1_i32 = arith.constant 1 : i32
    %0 = arith.muli %arg0, %c1_i32 : i32
    %1 = arith.addi %0, %arg1 : i32
    %c0_i32 = arith.constant 0 : i32
    %2 = arith.minsi %1, %c0_i32 : i32
    %c0_i32_0 = arith.constant 0 : i32
    %c0_i32_1 = arith.constant 0 : i32
    return %2, %c0_i32_0 : i32, i32
  }
  func.func @transform_1(%arg0: i32, %arg1: i32) -> (i32, i32) {
    %c1_i32 = arith.constant 1 : i32
    %0 = arith.muli %arg0, %c1_i32 : i32
    %1 = arith.addi %0, %arg1 : i32
    %c0_i32 = arith.constant 0 : i32
    %c0_i32_0 = arith.constant 0 : i32
    return %1, %c0_i32 : i32, i32
  }
  func.func @transform_2(%arg0: i32, %arg1: i32) -> (i32, i32) {
    %c1_i32 = arith.constant 1 : i32
    %0 = arith.muli %arg0, %c1_i32 : i32
    %1 = arith.addi %0, %arg1 : i32
    %c0_i32 = arith.constant 0 : i32
    %c0_i32_0 = arith.constant 0 : i32
    return %1, %c0_i32 : i32, i32
  }
  func.func @transform_3(%arg0: i32, %arg1: i32) -> (i32, i32, i32) {
    %c0_i32 = arith.constant 0 : i32
    %c0_i32_0 = arith.constant 0 : i32
    %c0_i32_1 = arith.constant 0 : i32
    return %arg0, %c0_i32, %c0_i32_0 : i32, i32, i32
  }
}

</mosaic_0001>

<llo_original>
// kernel: tpu_custom_call.1
$region0: #{tpu_custom_call.1}
  #allocation0 [shape = 'u32[]', space=smem, size = 0x4, offset = 0x4, fixed_abs, tag = 'smem constant byte address 0x4 - core index']
  #allocation1 [shape = 'u32[144,128]{1,0:T(1,128)}', space=vmem, size = 0x12000, scoped, tag = 'internal scratch']
  #allocation2 [shape = 'f32[8,1]{1,0:T(8,128)}', space=vmem, size = 0x1000, scoped, tag = 'scratch operand']
  %s0 = inlined_call_operand.vmem [shape: f32[8,16], index: 0, kind: input, shape index: {}]
  %s1 = inlined_call_operand.vmem [shape: s32[8,1], index: 1, kind: input, shape index: {}]
  %s2 = inlined_call_operand.vmem [shape: f32[8,1], index: 2, kind: input, shape index: {}]
  %s3 = inlined_call_operand.hbm [shape: f32[1,1,1], index: 3, kind: output, shape index: {}]
  %s4 = sld [smem:[#allocation0]]
  $region30: #{tpu_custom_call.1} parent=0
    _
  %s6 = ssub.s32 1, %s4
  %s7 = scalar_select 0, %s6, %s4
  $region1: #{tpu_custom_call.1} parent=0
    #allocation3 [shape = 'u8[512]{0}', space=vmem, size = 0x400, scoped, tag = 'output window, operand 0, single buffered']
    #allocation4 [shape = 's32[1]{0}', space=sflag, size = 0x4, scoped, tag = 'scoped memory for tpu_custom_call.1']
    %8 = vsyncpa [#allocation4], 0
    // Predicated region
    $region2: #{tpu_custom_call.1} parent=1 // pred_check
      _
    $region3: #{tpu_custom_call.1} parent=1 // pred_check_branch
      %10 = sbr.rel (0) target = $region5
    $region4: #{tpu_custom_call.1} parent=1 // pred_region
      %s11 = sadd.s32 0, 0
      %p12 = scmp.lt.s32.totalorder %s11, 0
      %s13 = scalar_select %p12, %s11, 0
      %p14 = scmp.lt.s32.totalorder %s13, 0
      %s15 = scalar_select %p14, %s13, 0
      %s16 = smul.addr %s15, 8
      %s17 = scalar_lea.vmem %s0, %s16
      %s18 = sadd.s32 0, 0
      %p19 = scmp.lt.s32.totalorder %s18, 0
      %s20 = scalar_select %p19, %s18, 0
    $region5: #{tpu_custom_call.1} parent=1 // pred_fallthru
      _
    // Predicated region
    $region6: #{tpu_custom_call.1} parent=1 // pred_check
      _
    $region7: #{tpu_custom_call.1} parent=1 // pred_check_branch
      %22 = sbr.rel (0) target = $region9
    $region8: #{tpu_custom_call.1} parent=1 // pred_region
      %s23 = sadd.s32 0, 0
      %p24 = scmp.lt.s32.totalorder %s23, 0
      %s25 = scalar_select %p24, %s23, 0
      %s26 = smul.addr %s25, 8
      %s27 = scalar_lea.vmem %s1, %s26
      %s28 = sadd.s32 0, 0
    $region9: #{tpu_custom_call.1} parent=1 // pred_fallthru
      _
    // Predicated region
    $region10: #{tpu_custom_call.1} parent=1 // pred_check
      _
    $region11: #{tpu_custom_call.1} parent=1 // pred_check_branch
      %30 = sbr.rel (0) target = $region13
    $region12: #{tpu_custom_call.1} parent=1 // pred_region
      %s31 = sadd.s32 0, 0
      %p32 = scmp.lt.s32.totalorder %s31, 0
      %s33 = scalar_select %p32, %s31, 0
      %s34 = smul.addr %s33, 8
      %s35 = scalar_lea.vmem %s2, %s34
      %s36 = sadd.s32 0, 0
    $region13: #{tpu_custom_call.1} parent=1 // pred_fallthru
      _
    %s37 = sadd.s32 0, 0
    %p38 = scmp.lt.s32.totalorder %s37, 0
    %s39 = scalar_select %p38, %s37, 0
    %p40 = scmp.lt.s32.totalorder %s39, 0
    %s41 = scalar_select %p40, %s39, 0
    %s42 = smul.addr %s41, 8
    %s43 = scalar_lea.vmem %s0, %s42
    %s44 = sadd.s32 0, 0
    %p45 = scmp.lt.s32.totalorder %s44, 0
    %s46 = scalar_select %p45, %s44, 0
    %s47 = smul.addr %s46, 8
    %s48 = scalar_lea.vmem %s1, %s47
    %s49 = sadd.s32 0, 0
    %p50 = scmp.lt.s32.totalorder %s49, 0
    %s51 = scalar_select %p50, %s49, 0
    %s52 = smul.addr %s51, 8
    %s53 = scalar_lea.vmem %s2, %s52
    %s54 = sadd.s32 0, 0
    %p55 = scmp.lt.s32.totalorder %s54, 0
    %s56 = scalar_select %p55, %s54, 0
    %p57 = scmp.lt.s32.totalorder %s56, 0
    %s58 = scalar_select %p57, %s56, 0
    %s59 = smul.addr %s58, 8
    %s60 = scalar_lea.vmem %s0, %s59
    %s61 = sadd.s32 0, 0
    %p62 = scmp.lt.s32.totalorder %s61, 0
    %s63 = scalar_select %p62, %s61, 0
    %s64 = sadd.s32 0, 0
    %p65 = scmp.lt.s32.totalorder %s64, 0
    %s66 = scalar_select %p65, %s64, 0
    %s67 = smul.addr %s66, 8
    %s68 = scalar_lea.vmem %s1, %s67
    %s69 = sadd.s32 0, 0
    %s70 = sadd.s32 0, 0
    %p71 = scmp.lt.s32.totalorder %s70, 0
    %s72 = scalar_select %p71, %s70, 0
    %s73 = smul.addr %s72, 8
    %s74 = scalar_lea.vmem %s2, %s73
    %s75 = sadd.s32 0, 0
    %p76 = scmp.eq.s32.totalorder 0, 0
    // Predicated region
    $region14: #{tpu_custom_call.1} parent=1 // pred_check
      %p77 = pneg %p76
    $region15: #{tpu_custom_call.1} parent=1 // pred_check_branch
      %79 = sbr.rel (%p77) target = $region17
    $region16: #{tpu_custom_call.1} parent=1 // pred_region
      %vm80 = vcmask 7168
      %81 = vst.msk [vmem:[#allocation2] sm:$0xff] %vm80, 0.0
    $region17: #{tpu_custom_call.1} parent=1 // pred_fallthru
      _
    %v82 = vld [vmem:[%s60] sm:$0xff]
    %v83 = vld [vmem:[%s68] sm:$0xff]
    %v84 = vld [vmem:[%s74] sm:$0xff]
    %s85 = sadd.s32 0, 0
    %s86 = smul.u32 %s85, 8
    %v87 = vlaneseq
    %v88 = vshrl.u32 %v87, 7
    %v89 = vstv %s86
    %v90 = vadd.s32 %v89, %v88
    %vm91 = vcmp.lt.s32.totalorder %v90, 8
    %v92 = vlaneseq
    %v93 = vand.u32 %v92, 127
    %94 = vset.pattern.permute.xlu0 0
    %95 = vperm.xlu0 %94, %v83
    %v96 = vpop.permute.xlu0 %95
    %vm97 = vcmp.eq.s32.totalorder %v93, %v96
    %v98 = vsel %vm91, 1, 0
    %vm99 = vcmp.eq.s32.totalorder %v98, 1
    %vm100 = vmand %vm99, %vm97
    %v101 = vsel %vm100, %v82, 0.0
    %vm102 = vcmask 130048
    %v103 = vsel %vm102, %v101, 0.0
    %104 = vadd.xlane.f32.xlu0 %v103
    %v105 = vpop.xlane.xlu0 %104
    %v106 = vld [vmem:[#allocation2] sm:$0xff]
    %v107 = vmul.f32 %v105, %v84
    %v108 = vadd.f32 %v106, %v107
    %vm109 = vcmask 7168
    %110 = vst.msk [vmem:[#allocation2] sm:$0xff] %vm109, %v108
    // Predicated region
    $region18: #{tpu_custom_call.1} parent=1 // pred_check
      %p111 = pneg %p76
    $region19: #{tpu_custom_call.1} parent=1 // pred_check_branch
      %113 = sbr.rel (%p111) target = $region21
    $region20: #{tpu_custom_call.1} parent=1 // pred_region
      %v114 = vld [vmem:[#allocation2] sm:$0xff]
      %v115 = vsel %vm109, %v114, 0.0
      %116 = vadd.xlane.f32.xlu0 %v115
      %v117 = vpop.xlane.xlu0 %116
      %v118 = vrot.slane %v117, 4
      %v119 = vadd.f32 %v117, %v118
      %v120 = vrot.slane %v119, 2
      %v121 = vadd.f32 %v119, %v120
      %v122 = vrot.slane %v121, 1
      %v123 = vadd.f32 %v121, %v122
      %s124 = vtos %v123
      %s125 = ssub.f32 0.0, %s124
      %v126 = vstv %s125
      %vm127 = vcmask 0
      %128 = vst.msk [vmem:[#allocation3] sm:$0x1] %vm127, %v126
    $region21: #{tpu_custom_call.1} parent=1 // pred_fallthru
      _
    // Predicated region
    $region22: #{tpu_custom_call.1} parent=1 // pred_check
      _
    $region23: #{tpu_custom_call.1} parent=1 // pred_check_branch
      %130 = sbr.rel (0) target = $region25
    $region24: #{tpu_custom_call.1} parent=1 // pred_region
      %s132 = ssub.s32 16, 16
      %133 = vsyncadd [#allocation4], %s132
      %s135 = sshll.u32 [#allocation3], 4
      %s136 = int_to_ptr.vmem [resolvable:$true] %s135
      %138 = dma.vmem_to_hbm [thread:$0]  %s136, 16, %s3, [#allocation4]
    $region25: #{tpu_custom_call.1} parent=1 // pred_fallthru
      _
    // Predicated region
    $region26: #{tpu_custom_call.1} parent=1 // pred_check
      _
    $region27: #{tpu_custom_call.1} parent=1 // pred_check_branch
      %140 = sbr.rel (0) target = $region29
    $region28: #{tpu_custom_call.1} parent=1 // pred_region
      %141 = dma.done [#allocation4], 16
    $region29: #{tpu_custom_call.1} parent=1 // pred_fallthru
      _
    %142 = vsyncpa [#allocation4], 1

</llo_original>
